<compile_context>
chip_gen: v5e
topology: v5e:2x2
jax: 0.10.0
libtpu: 0.0.40
codegen_flags: <defaults>
</compile_context>

<pallas_src>
import jax
import jax.numpy as jnp
from jax import lax
from jax.experimental import pallas as pl
from jax.experimental.pallas import tpu as pltpu

# Problem sizes (small, consistent with an "input layer" conv)
B, CIN, H, W = 2, 4, 16, 16
COUT, KH, KW = 8, 3, 3
PAD = 1
K = CIN * KH * KW          # 36  (contraction depth)
HW = H * W                 # 256 (per-batch lane width; 128-aligned)
N = B * HW                 # 512 (total lane width of the single matmul)


def _input_layer_kernel(p_ref, w_ref, b_ref, o_ref):
    """Fused conv-as-matmul + bias + ReLU, one MXU pass for the whole batch.

    p_ref: (K, B*HW)      im2col patches, lane axis = batch-major flattened HW
    w_ref: (COUT, K)      packed conv weights
    b_ref: (COUT, 1)      bias, broadcast along lanes
    o_ref: (B, COUT, HW)  output in NCHW-flatten order, lane axis = HW
    """
    res = jnp.dot(w_ref[...], p_ref[...],
                  preferred_element_type=jnp.float32)          # (COUT, B*HW)
    res = jnp.maximum(res + b_ref[...], 0.0)                   # bias + ReLU (VPU)
    for b in range(B):                                         # B=2, unrolled
        # Lane slice starts at b*256 -> 128-aligned, unmasked stores.
        o_ref[b] = res[:, b * HW:(b + 1) * HW].astype(o_ref.dtype)


def input_layer_forward(x_nchw, w_oihw, bias):
    """Pallas implementation of _InputLayer.forward.

    x_nchw: (B, CIN, H, W) float32
    w_oihw: (COUT, CIN, KH, KW) float32  (PyTorch Conv2d weight layout)
    bias:   (COUT,) float32
    returns: (B, COUT*H*W) float32, matching x.view(B, -1) on NCHW output.
    """
    # --- im2col in the wrapper, K leading so batch folds into the lane axis.
    #     K order = (cin, kh, kw), matching the contiguous flatten of the
    #     OIHW weight. Lane order = (b, h, w) = NCHW spatial flatten.
    x_pad = jnp.pad(x_nchw, ((0, 0), (0, 0), (PAD, PAD), (PAD, PAD)))
    taps = [x_pad[:, :, kh:kh + H, kw:kw + W]
            for kh in range(KH) for kw in range(KW)]           # 9 x (B,CIN,H,W)
    patches = jnp.stack(taps, axis=2).reshape(B, K, HW)        # (B, 36, 256)
    patches = jnp.transpose(patches, (1, 0, 2)).reshape(K, N)  # (36, 512)

    w2 = w_oihw.reshape(COUT, K)     # free contiguous reshape, (cin,kh,kw)-major
    b2 = bias.reshape(COUT, 1)

    out = pl.pallas_call(
        _input_layer_kernel,
        out_shape=jax.ShapeDtypeStruct((B, COUT, HW), jnp.float32),
        grid=(1,),                                             # single grid step
        in_specs=[
            pl.BlockSpec((K, N), lambda i: (0, 0)),
            pl.BlockSpec((COUT, K), lambda i: (0, 0)),
            pl.BlockSpec((COUT, 1), lambda i: (0, 0)),
        ],
        out_specs=pl.BlockSpec((B, COUT, HW), lambda i: (0, 0, 0)),
        compiler_params=pltpu.CompilerParams(
            dimension_semantics=("arbitrary",),
            # Let XLA fuse the im2col producer into the patches operand read
            # instead of materializing the 9x-expanded array in HBM.
            allow_input_fusion=[True, False, False]),
    )(patches, w2, b2)                                         # (B, COUT, HW)

    # (B, COUT, HW) is already NCHW channel-major order, so PyTorch's
    # x.view(B, -1) is a free contiguous reshape (no transpose, no HBM trip).
    return out.reshape(B, COUT * HW)


def _reference_forward(x_nchw, w_oihw, bias):
    """Pure-JAX reference (lax.conv) for validation."""
    y = lax.conv_general_dilated(
        x_nchw, w_oihw, window_strides=(1, 1),
        padding=((PAD, PAD), (PAD, PAD)),
        dimension_numbers=("NCHW", "OIHW", "NCHW"))
    y = jnp.maximum(y + bias.reshape(1, COUT, 1, 1), 0.0)
    return y.reshape(B, -1)


if __name__ == "__main__":
    key = jax.random.PRNGKey(0)
    kx, kw, kb = jax.random.split(key, 3)
    x = jax.random.normal(kx, (B, CIN, H, W), dtype=jnp.float32)
    # Deterministic synthetic parameters (shapes from Conv2d(4, 8, 3, padding=1)).
    # TODO(synk): the real module takes an arbitrary user-supplied nn.Sequential;
    # only this representative Conv2d->ReLU->flatten stack is implemented here.
    w = jax.random.normal(kw, (COUT, CIN, KH, KW), dtype=jnp.float32) * 0.1
    b = jax.random.normal(kb, (COUT,), dtype=jnp.float32) * 0.1

    fwd = jax.jit(input_layer_forward)
    out = jax.block_until_ready(fwd(x, w, b))

    ref = jax.block_until_ready(_reference_forward(x, w, b))
    assert out.shape == (B, COUT * H * W), out.shape
    assert jnp.allclose(out, ref, atol=1e-4, rtol=1e-4), "mismatch vs reference"

    print("KERNEL_OK")
</pallas_src>

<mosaic_0001>
module attributes {stable_mosaic.version = 11 : i64} {
  func.func @_input_layer_kernel(%arg0: i32, %arg1: memref<36x512xf32, #tpu.memory_space<vmem>>, %arg2: memref<8x36xf32, #tpu.memory_space<vmem>>, %arg3: memref<8x1xf32, #tpu.memory_space<vmem>>, %arg4: memref<2x8x256xf32, #tpu.memory_space<vmem>>) attributes {dimension_semantics = [#tpu.dimension_semantics<arbitrary>], iteration_bounds = array<i64: 1>, scalar_prefetch = 0 : i64, scratch_operands = 0 : i64, tpu.core_type = #tpu.core_type<tc>, window_params = [{pipeline_mode = #tpu.pipeline_mode<synchronous>, transform_indices = @transform_0, window_bounds = array<i64: 36, 512>}, {pipeline_mode = #tpu.pipeline_mode<synchronous>, transform_indices = @transform_1, window_bounds = array<i64: 8, 36>}, {pipeline_mode = #tpu.pipeline_mode<synchronous>, transform_indices = @transform_2, window_bounds = array<i64: 8, 1>}, {pipeline_mode = #tpu.pipeline_mode<synchronous>, transform_indices = @transform_3, window_bounds = array<i64: 2, 8, 256>}]} {
    %c0 = arith.constant 0 : index
    %c0_0 = arith.constant 0 : index
    %0 = vector.load %arg2[%c0, %c0_0] : memref<8x36xf32, #tpu.memory_space<vmem>>, vector<8x36xf32>
    %c0_1 = arith.constant 0 : index
    %c0_2 = arith.constant 0 : index
    %1 = vector.load %arg1[%c0_1, %c0_2] : memref<36x512xf32, #tpu.memory_space<vmem>>, vector<36x512xf32>
    %cst = arith.constant dense<0.000000e+00> : vector<8x512xf32>
    %2 = tpu.matmul %0, %1, %cst {dimension_numbers = #tpu.dot_dimension_numbers<[1], [0], [0], [1], [0, 0, 1, 1], [], []>} : vector<8x36xf32>, vector<36x512xf32>, vector<8x512xf32> -> vector<8x512xf32>
    %c0_3 = arith.constant 0 : index
    %c0_4 = arith.constant 0 : index
    %3 = vector.load %arg3[%c0_3, %c0_4] : memref<8x1xf32, #tpu.memory_space<vmem>>, vector<8x1xf32>
    %4 = vector.broadcast %3 : vector<8x1xf32> to vector<8x512xf32>
    %5 = arith.addf %2, %4 : vector<8x512xf32>
    %cst_5 = arith.constant 0.000000e+00 : f32
    %6 = vector.broadcast %cst_5 : f32 to vector<8x512xf32>
    %7 = arith.maximumf %5, %6 : vector<8x512xf32>
    %8 = vector.extract_strided_slice %7 {offsets = [0, 0], sizes = [8, 256], strides = [1, 1]} : vector<8x512xf32> to vector<8x256xf32>
    %c0_6 = arith.constant 0 : index
    %c0_7 = arith.constant 0 : index
    %c0_8 = arith.constant 0 : index
    %9 = vector.load %arg4[%c0_6, %c0_7, %c0_8] : memref<2x8x256xf32, #tpu.memory_space<vmem>>, vector<1x8x256xf32>
    %10 = vector.shape_cast %9 : vector<1x8x256xf32> to vector<8x256xf32>
    %11 = vector.shape_cast %8 : vector<8x256xf32> to vector<1x8x256xf32>
    tpu.vector_store %arg4[%c0_6, %c0_7, %c0_8], %11 {strides = array<i32>} : memref<2x8x256xf32, #tpu.memory_space<vmem>>, vector<1x8x256xf32>,
    %12 = vector.extract_strided_slice %7 {offsets = [0, 256], sizes = [8, 256], strides = [1, 1]} : vector<8x512xf32> to vector<8x256xf32>
    %c1 = arith.constant 1 : index
    %c0_9 = arith.constant 0 : index
    %c0_10 = arith.constant 0 : index
    %13 = vector.load %arg4[%c1, %c0_9, %c0_10] : memref<2x8x256xf32, #tpu.memory_space<vmem>>, vector<1x8x256xf32>
    %14 = vector.shape_cast %13 : vector<1x8x256xf32> to vector<8x256xf32>
    %15 = vector.shape_cast %12 : vector<8x256xf32> to vector<1x8x256xf32>
    tpu.vector_store %arg4[%c1, %c0_9, %c0_10], %15 {strides = array<i32>} : memref<2x8x256xf32, #tpu.memory_space<vmem>>, vector<1x8x256xf32>,
    return
  }
  func.func @transform_0(%arg0: i32) -> (i32, i32) {
    %c0_i32 = arith.constant 0 : i32
    %c0_i32_0 = arith.constant 0 : i32
    %c0_i32_1 = arith.constant 0 : i32
    return %c0_i32, %c0_i32_0 : i32, i32
  }
  func.func @transform_1(%arg0: i32) -> (i32, i32) {
    %c0_i32 = arith.constant 0 : i32
    %c0_i32_0 = arith.constant 0 : i32
    %c0_i32_1 = arith.constant 0 : i32
    return %c0_i32, %c0_i32_0 : i32, i32
  }
  func.func @transform_2(%arg0: i32) -> (i32, i32) {
    %c0_i32 = arith.constant 0 : i32
    %c0_i32_0 = arith.constant 0 : i32
    %c0_i32_1 = arith.constant 0 : i32
    return %c0_i32, %c0_i32_0 : i32, i32
  }
  func.func @transform_3(%arg0: i32) -> (i32, i32, i32) {
    %c0_i32 = arith.constant 0 : i32
    %c0_i32_0 = arith.constant 0 : i32
    %c0_i32_1 = arith.constant 0 : i32
    %c0_i32_2 = arith.constant 0 : i32
    return %c0_i32, %c0_i32_0, %c0_i32_1 : i32, i32, i32
  }
}

</mosaic_0001>

<llo_original>
// kernel: input_layer_forward.1
$region0: #{input_layer_forward.1}
  #allocation0 [shape = 'u32[]', space=smem, size = 0x4, offset = 0x4, fixed_abs, tag = 'smem constant byte address 0x4 - core index']
  #allocation1 [shape = 'u32[72,128]{1,0:T(1,128)}', space=vmem, size = 0x9000, scoped, tag = 'internal scratch']
  %s0 = inlined_call_operand.vmem [shape: f32[36,512], index: 0, kind: input, shape index: {}]
  %s1 = inlined_call_operand.vmem [shape: f32[8,36], index: 1, kind: input, shape index: {}]
  %s2 = inlined_call_operand.vmem [shape: f32[8,1], index: 2, kind: input, shape index: {}]
  %s3 = inlined_call_operand.vmem [shape: f32[2,8,256], index: 3, kind: output, shape index: {}]
  %s4 = sld [smem:[#allocation0]]
  $region22: #{input_layer_forward.1} parent=0
    _
  %s6 = ssub.s32 1, %s4
  %s7 = scalar_select 0, %s6, %s4
  // Predicated region
  $region2: #{input_layer_forward.1} parent=0 // pred_check
    _
  $region3: #{input_layer_forward.1} parent=0 // pred_check_branch
    %9 = sbr.rel (0) target = $region5
  $region4: #{input_layer_forward.1} parent=0 // pred_region
    _
  $region5: #{input_layer_forward.1} parent=0 // pred_fallthru
    _
  // Predicated region
  $region6: #{input_layer_forward.1} parent=0 // pred_check
    _
  $region7: #{input_layer_forward.1} parent=0 // pred_check_branch
    %11 = sbr.rel (0) target = $region9
  $region8: #{input_layer_forward.1} parent=0 // pred_region
    _
  $region9: #{input_layer_forward.1} parent=0 // pred_fallthru
    _
  // Predicated region
  $region10: #{input_layer_forward.1} parent=0 // pred_check
    _
  $region11: #{input_layer_forward.1} parent=0 // pred_check_branch
    %13 = sbr.rel (0) target = $region13
  $region12: #{input_layer_forward.1} parent=0 // pred_region
    _
  $region13: #{input_layer_forward.1} parent=0 // pred_fallthru
    _
  %v14 = vld [vmem:[%s1] sm:$0xff]
  %v15 = vld [vmem:[%s0] sm:$0xff]
  %v16 = vld [vmem:[%s0 + $0x8] sm:$0xff]
  %v17 = vld [vmem:[%s0 + $0x10] sm:$0xff]
  %v18 = vld [vmem:[%s0 + $0x18] sm:$0xff]
  %v19 = vld [vmem:[%s0 + $0x20] sm:$0xff]
  %v20 = vld [vmem:[%s0 + $0x28] sm:$0xff]
  %v21 = vld [vmem:[%s0 + $0x30] sm:$0xff]
  %v22 = vld [vmem:[%s0 + $0x38] sm:$0xff]
  %v23 = vld [vmem:[%s0 + $0x40] sm:$0xff]
  %v24 = vld [vmem:[%s0 + $0x48] sm:$0xff]
  %v25 = vld [vmem:[%s0 + $0x50] sm:$0xff]
  %v26 = vld [vmem:[%s0 + $0x58] sm:$0xff]
  %v27 = vld [vmem:[%s0 + $0x60] sm:$0xff]
  %v28 = vld [vmem:[%s0 + $0x68] sm:$0xff]
  %v29 = vld [vmem:[%s0 + $0x70] sm:$0xff]
  %v30 = vld [vmem:[%s0 + $0x78] sm:$0xff]
  %v31 = vld [vmem:[%s0 + $0x80] sm:$0xf]
  %v32 = vld [vmem:[%s0 + $0x88] sm:$0xf]
  %v33 = vld [vmem:[%s0 + $0x90] sm:$0xf]
  %v34 = vld [vmem:[%s0 + $0x98] sm:$0xf]
  %v35 = vld [vmem:[%s2] sm:$0xff]
  %37 = vset.pattern.permute.xlu0 0
  %38 = vperm.xlu0 %37, %v35
  %v39 = vpop.permute.xlu0 %38
  %vm41 = vcmask 293888
  %v43 = vsel %vm41, %v14, 0
  %vm45 = vcmask 1043456
  %v47 = vsel %vm45, %v31, 0
  %v50 = vsel %vm45, %v32, 0
  %v53 = vsel %vm45, %v33, 0
  %v56 = vsel %vm45, %v34, 0
  %58 = vmatpush.msra.mxu0 0.0
  %59 = vmatpush.msra.mxu0 0.0
  %60 = vmatpush.msra.mxu0 0.0
  %61 = vmatpush.msra.mxu0 0.0
  %62 = vmatpush.msra.mxu0 0.0
  %63 = vmatpush.msra.mxu0 0.0
  %64 = vmatpush.msra.mxu0 0.0
  %65 = vmatpush.msra.mxu0 0.0
  %66 = vmatpush.msra.mxu0 0.0
  %67 = vmatpush.msra.mxu0 0.0
  %68 = vmatpush.msra.mxu0 0.0
  %69 = vmatpush.msra.mxu0 %v47
  %70 = vmatpush.msra.mxu0 %v27
  %71 = vmatpush.msra.mxu0 %v23
  %72 = vmatpush.msra.mxu0 %v19
  %73 = vmatpush.msra.mxu0 %v15
  %74 = vmatmul.f32.gmra.mxu0 %v43
  %v75 = vpop.f32.mrf.mxu0
  %v76 = vadd.f32 %v39, %v75
  %77 = vdwg.mxu0
  %78 = vmatpush.msra.mxu0 0.0
  %79 = vmatpush.msra.mxu0 0.0
  %80 = vmatpush.msra.mxu0 0.0
  %81 = vmatpush.msra.mxu0 0.0
  %82 = vmatpush.msra.mxu0 0.0
  %83 = vmatpush.msra.mxu0 0.0
  %84 = vmatpush.msra.mxu0 0.0
  %85 = vmatpush.msra.mxu0 0.0
  %86 = vmatpush.msra.mxu0 0.0
  %87 = vmatpush.msra.mxu0 0.0
  %88 = vmatpush.msra.mxu0 0.0
  %89 = vmatpush.msra.mxu0 %v50
  %90 = vmatpush.msra.mxu0 %v28
  %91 = vmatpush.msra.mxu0 %v24
  %92 = vmatpush.msra.mxu0 %v20
  %93 = vmatpush.msra.mxu0 %v16
  %94 = vmatmul.f32.gmra.mxu0 %v43
  %v95 = vpop.f32.mrf.mxu0
  %v96 = vadd.f32 %v39, %v95
  %97 = vdwg.mxu0
  %98 = vmatpush.msra.mxu0 0.0
  %99 = vmatpush.msra.mxu0 0.0
  %100 = vmatpush.msra.mxu0 0.0
  %101 = vmatpush.msra.mxu0 0.0
  %102 = vmatpush.msra.mxu0 0.0
  %103 = vmatpush.msra.mxu0 0.0
  %104 = vmatpush.msra.mxu0 0.0
  %105 = vmatpush.msra.mxu0 0.0
  %106 = vmatpush.msra.mxu0 0.0
  %107 = vmatpush.msra.mxu0 0.0
  %108 = vmatpush.msra.mxu0 0.0
  %109 = vmatpush.msra.mxu0 %v53
  %110 = vmatpush.msra.mxu0 %v29
  %111 = vmatpush.msra.mxu0 %v25
  %112 = vmatpush.msra.mxu0 %v21
  %113 = vmatpush.msra.mxu0 %v17
  %114 = vmatmul.f32.gmra.mxu0 %v43
  %v115 = vpop.f32.mrf.mxu0
  %v116 = vadd.f32 %v39, %v115
  %117 = vdwg.mxu0
  %118 = vmatpush.msra.mxu0 0.0
  %119 = vmatpush.msra.mxu0 0.0
  %120 = vmatpush.msra.mxu0 0.0
  %121 = vmatpush.msra.mxu0 0.0
  %122 = vmatpush.msra.mxu0 0.0
  %123 = vmatpush.msra.mxu0 0.0
  %124 = vmatpush.msra.mxu0 0.0
  %125 = vmatpush.msra.mxu0 0.0
  %126 = vmatpush.msra.mxu0 0.0
  %127 = vmatpush.msra.mxu0 0.0
  %128 = vmatpush.msra.mxu0 0.0
  %129 = vmatpush.msra.mxu0 %v56
  %130 = vmatpush.msra.mxu0 %v30
  %131 = vmatpush.msra.mxu0 %v26
  %132 = vmatpush.msra.mxu0 %v22
  %133 = vmatpush.msra.mxu0 %v18
  %134 = vmatmul.f32.gmra.mxu0 %v43
  %v135 = vpop.f32.mrf.mxu0
  %v136 = vadd.f32 %v39, %v135
  %137 = vdwg.mxu0
  %v138 = vmax.f32 %v76, 0.0
  %v139 = vmax.f32 %v96, 0.0
  %v140 = vmax.f32 %v116, 0.0
  %v141 = vmax.f32 %v136, 0.0
  %142 = vst [vmem:[%s3] sm:$0xff] %v138
  %143 = vst [vmem:[%s3 + $0x8] sm:$0xff] %v139
  %s144 = scalar_lea.vmem %s3, 16
  %145 = vst [vmem:[%s144] sm:$0xff] %v140
  %146 = vst [vmem:[%s144 + $0x8] sm:$0xff] %v141
  // Predicated region
  $region14: #{input_layer_forward.1} parent=0 // pred_check
    _
  $region15: #{input_layer_forward.1} parent=0 // pred_check_branch
    %148 = sbr.rel (0) target = $region17
  $region16: #{input_layer_forward.1} parent=0 // pred_region
    _
  $region17: #{input_layer_forward.1} parent=0 // pred_fallthru
    _
  // Predicated region
  $region18: #{input_layer_forward.1} parent=0 // pred_check
    _
  $region19: #{input_layer_forward.1} parent=0 // pred_check_branch
    %150 = sbr.rel (0) target = $region21
  $region20: #{input_layer_forward.1} parent=0 // pred_region
    _
  $region21: #{input_layer_forward.1} parent=0 // pred_fallthru
    _

</llo_original>
